<compile_context>
chip_gen: v7x
topology: tpu7x:2x2x1
jax: 0.10.0
libtpu: 0.0.40
codegen_flags: <defaults>
</compile_context>

<pallas_src>
import jax
import jax.numpy as jnp
from jax.experimental import pallas as pl
from jax.experimental.pallas import tpu as pltpu


def _round_up(x, m):
    return ((x + m - 1) // m) * m


def mlp_kernel(x_ref, w_ref, b_ref, o_ref, h_ref):
    """One (token-tile, layer) grid step.

    x_ref: (TM, Hp)    bf16 input tile
    w_ref: (1, Hp, Hp) bf16 weights of the current layer (in, out)
    b_ref: (1, 1, Hp)  f32 bias of the current layer
    o_ref: (TM, Hp)    f32 output tile (written on the last layer only)
    h_ref: (TM, Hp)    f32 VMEM scratch carrying activations across layers
    """
    l = pl.program_id(1)

    @pl.when(l == 0)
    def _init():
        h_ref[...] = x_ref[...].astype(jnp.float32)

    # bf16 x bf16 -> f32 accumulate on the MXU, f32 bias add on the VPU.
    h = jnp.dot(h_ref[...].astype(jnp.bfloat16), w_ref[0],
                preferred_element_type=jnp.float32) + b_ref[0]
    # Dropout(p) in eval mode == identity.
    h_ref[...] = h

    @pl.when(l == pl.num_programs(1) - 1)
    def _finalize():
        o_ref[...] = h.astype(o_ref.dtype)


def mlp_forward(x, w_stack, b_stack, *, tm=256):
    """x: (N, H) f32; w_stack: (L, H, H) f32 (already (in, out)); b_stack: (L, 1, H) f32."""
    N, H = x.shape
    L = w_stack.shape[0]

    Hp = _round_up(max(H, 128), 128)          # lane-dense feature dim
    TM = min(tm, _round_up(N, 16))            # token tile (mult of 16 for bf16)
    Np = _round_up(N, TM)                     # pad tokens to a multiple of TM

    # Zero-pad: padded feature lanes stay exactly zero through every layer,
    # padded token rows are sliced off at the end.
    xp = jnp.zeros((Np, Hp), jnp.bfloat16).at[:N, :H].set(x.astype(jnp.bfloat16))
    wp = jnp.zeros((L, Hp, Hp), jnp.bfloat16).at[:, :H, :H].set(
        w_stack.astype(jnp.bfloat16))
    bp = jnp.zeros((L, 1, Hp), jnp.float32).at[:, :, :H].set(
        b_stack.astype(jnp.float32))

    cost = pl.CostEstimate(
        flops=2 * Np * Hp * Hp * L,
        transcendentals=0,
        bytes_accessed=xp.size * 2 + wp.size * 2 + bp.size * 4 + Np * Hp * 4,
    )

    # VMEM budget: double-buffered x/w/b/out blocks + the f32 carry scratch,
    # with headroom. Raise the scoped limit only as far as needed (cap 96 MiB
    # so it still fits v7x's 64 MiB per-TC VMEM with the compiler's own slack
    # handling on v5e/v6e).
    vmem_needed = (2 * TM * Hp * 2          # x tile, double-buffered, bf16
                   + 2 * Hp * Hp * 2        # weight block, double-buffered, bf16
                   + 2 * Hp * 4             # bias block, f32
                   + 2 * TM * Hp * 4        # output tile, double-buffered, f32
                   + TM * Hp * 4)           # activation scratch, f32
    vmem_limit = min(int(vmem_needed * 1.5) + (1 << 20), 96 << 20)

    out = pl.pallas_call(
        mlp_kernel,
        out_shape=jax.ShapeDtypeStruct((Np, Hp), jnp.float32),
        grid_spec=pltpu.PrefetchScalarGridSpec(
            num_scalar_prefetch=0,
            grid=(Np // TM, L),
            in_specs=[
                pl.BlockSpec((TM, Hp), lambda i, l: (i, 0)),
                pl.BlockSpec((1, Hp, Hp), lambda i, l: (l, 0, 0)),
                pl.BlockSpec((1, 1, Hp), lambda i, l: (l, 0, 0)),
            ],
            out_specs=pl.BlockSpec((TM, Hp), lambda i, l: (i, 0)),
            scratch_shapes=[pltpu.VMEM((TM, Hp), jnp.float32)],
        ),
        compiler_params=pltpu.CompilerParams(
            dimension_semantics=("parallel", "arbitrary"),
            vmem_limit_bytes=vmem_limit),
        cost_estimate=cost,
    )(xp, wp, bp)

    return out[:N, :H].astype(x.dtype)


def init_mlp_params(key, hidden_units):
    """Deterministic init mimicking nn.Linear (uniform +/- 1/sqrt(fan_in)).

    All entries of hidden_units must be equal (the PyTorch module only works
    in that case, since every Linear is (units -> units) applied in sequence).
    """
    H = hidden_units[0]
    assert all(u == H for u in hidden_units)
    L = len(hidden_units)
    ws, bs = [], []
    for _ in range(L):
        kw, kb, key = jax.random.split(key, 3)
        bound = 1.0 / jnp.sqrt(H)
        # torch weight is (out, in); store transposed (in, out) for x @ W.
        w = jax.random.uniform(kw, (H, H), jnp.float32, -bound, bound)
        b = jax.random.uniform(kb, (1, H), jnp.float32, -bound, bound)
        ws.append(w)
        bs.append(b)
    return jnp.stack(ws, axis=0), jnp.stack(bs, axis=0)


def mlp_reference_bf16(x, w_stack, b_stack):
    """Pure-JAX reference with the same bf16-input / f32-accumulate numerics."""
    h = x.astype(jnp.float32)
    for l in range(w_stack.shape[0]):
        h = jnp.dot(h.astype(jnp.bfloat16), w_stack[l].astype(jnp.bfloat16),
                    preferred_element_type=jnp.float32) + b_stack[l]
    return h


def mlp_reference_f32(x, w_stack, b_stack):
    h = x
    for l in range(w_stack.shape[0]):
        h = h @ w_stack[l] + b_stack[l]
    return h


if __name__ == "__main__":
    key = jax.random.PRNGKey(0)

    hidden_units = [32, 32]        # two Linear(32, 32) + Dropout layers
    dropout_rate = 0.1             # identity in eval mode

    batch, seq, H = 2, 8, hidden_units[0]
    kx, kp = jax.random.split(key)
    x = jax.random.normal(kx, (batch, seq, H), jnp.float32)

    w_stack, b_stack = init_mlp_params(kp, hidden_units)

    # Flatten leading dims into a token axis for the kernel, restore after.
    x2d = x.reshape(batch * seq, H)
    out2d = mlp_forward(x2d, w_stack, b_stack)
    out = out2d.reshape(batch, seq, H)
    jax.block_until_ready(out)

    # Check against a reference with matching bf16-matmul numerics (tight),
    # and against pure f32 math (loose, sanity only).
    ref_bf16 = mlp_reference_bf16(x2d, w_stack, b_stack).reshape(batch, seq, H)
    ref_f32 = mlp_reference_f32(x2d, w_stack, b_stack).reshape(batch, seq, H)
    assert jnp.allclose(out, ref_bf16, atol=1e-4, rtol=1e-4), "mismatch vs bf16 reference"
    assert jnp.allclose(out, ref_f32, atol=5e-2, rtol=5e-2), "mismatch vs f32 reference"

    print("KERNEL_OK")
</pallas_src>

<mosaic_0001>
module attributes {stable_mosaic.version = 11 : i64} {
  func.func @mlp_kernel(%arg0: i32, %arg1: i32, %arg2: memref<16x128xbf16, #tpu.memory_space<vmem>>, %arg3: memref<1x128x128xbf16, #tpu.memory_space<vmem>>, %arg4: memref<1x1x128xf32, #tpu.memory_space<vmem>>, %arg5: memref<16x128xf32, #tpu.memory_space<vmem>>, %arg6: memref<16x128xf32, #tpu.memory_space<vmem>>) attributes {dimension_semantics = [#tpu.dimension_semantics<parallel>, #tpu.dimension_semantics<arbitrary>], iteration_bounds = array<i64: 1, 2>, scalar_prefetch = 0 : i64, scratch_operands = 1 : i64, tpu.core_type = #tpu.core_type<tc>, window_params = [{transform_indices = @transform_0, window_bounds = array<i64: 16, 128>}, {transform_indices = @transform_1, window_bounds = array<i64: 1, 128, 128>}, {transform_indices = @transform_2, window_bounds = array<i64: 1, 1, 128>}, {transform_indices = @transform_3, window_bounds = array<i64: 16, 128>}]} {
    %c0_i32 = arith.constant 0 : i32
    %0 = arith.cmpi eq, %arg1, %c0_i32 : i32
    %1 = arith.extui %0 : i1 to i32
    %c0_i32_0 = arith.constant 0 : i32
    %2 = arith.cmpi ne, %1, %c0_i32_0 : i32
    scf.if %2 {
      %c0_11 = arith.constant 0 : index
      %c0_12 = arith.constant 0 : index
      %16 = vector.load %arg2[%c0_11, %c0_12] : memref<16x128xbf16, #tpu.memory_space<vmem>>, vector<16x128xbf16>
      %17 = arith.extf %16 : vector<16x128xbf16> to vector<16x128xf32>
      %c0_13 = arith.constant 0 : index
      %c0_14 = arith.constant 0 : index
      %18 = vector.load %arg6[%c0_13, %c0_14] : memref<16x128xf32, #tpu.memory_space<vmem>>, vector<16x128xf32>
      tpu.vector_store %arg6[%c0_13, %c0_14], %17 {strides = array<i32>} : memref<16x128xf32, #tpu.memory_space<vmem>>, vector<16x128xf32>,
    } else {
    }
    %c0 = arith.constant 0 : index
    %c0_1 = arith.constant 0 : index
    %3 = vector.load %arg6[%c0, %c0_1] : memref<16x128xf32, #tpu.memory_space<vmem>>, vector<16x128xf32>
    %4 = arith.truncf %3 : vector<16x128xf32> to vector<16x128xbf16>
    %c0_2 = arith.constant 0 : index
    %c0_3 = arith.constant 0 : index
    %c0_4 = arith.constant 0 : index
    %5 = vector.load %arg3[%c0_2, %c0_3, %c0_4] : memref<1x128x128xbf16, #tpu.memory_space<vmem>>, vector<1x128x128xbf16>
    %6 = vector.shape_cast %5 : vector<1x128x128xbf16> to vector<128x128xbf16>
    %cst = arith.constant dense<0.000000e+00> : vector<16x128xf32>
    %7 = tpu.matmul %4, %6, %cst {dimension_numbers = #tpu.dot_dimension_numbers<[1], [0], [0], [1], [0, 0, 1, 1], [], []>} : vector<16x128xbf16>, vector<128x128xbf16>, vector<16x128xf32> -> vector<16x128xf32>
    %c0_5 = arith.constant 0 : index
    %c0_6 = arith.constant 0 : index
    %c0_7 = arith.constant 0 : index
    %8 = vector.load %arg4[%c0_5, %c0_6, %c0_7] : memref<1x1x128xf32, #tpu.memory_space<vmem>>, vector<1x1x128xf32>
    %9 = vector.shape_cast %8 : vector<1x1x128xf32> to vector<1x128xf32>
    %10 = vector.broadcast %9 : vector<1x128xf32> to vector<16x128xf32>
    %11 = arith.addf %7, %10 : vector<16x128xf32>
    %c0_8 = arith.constant 0 : index
    %c0_9 = arith.constant 0 : index
    %12 = vector.load %arg6[%c0_8, %c0_9] : memref<16x128xf32, #tpu.memory_space<vmem>>, vector<16x128xf32>
    tpu.vector_store %arg6[%c0_8, %c0_9], %11 {strides = array<i32>} : memref<16x128xf32, #tpu.memory_space<vmem>>, vector<16x128xf32>,
    %c1_i32 = arith.constant 1 : i32
    %13 = arith.cmpi eq, %arg1, %c1_i32 : i32
    %14 = arith.extui %13 : i1 to i32
    %c0_i32_10 = arith.constant 0 : i32
    %15 = arith.cmpi ne, %14, %c0_i32_10 : i32
    scf.if %15 {
      %c0_11 = arith.constant 0 : index
      %c0_12 = arith.constant 0 : index
      %16 = vector.load %arg5[%c0_11, %c0_12] : memref<16x128xf32, #tpu.memory_space<vmem>>, vector<16x128xf32>
      tpu.vector_store %arg5[%c0_11, %c0_12], %11 {strides = array<i32>} : memref<16x128xf32, #tpu.memory_space<vmem>>, vector<16x128xf32>,
    } else {
    }
    return
  }
  func.func @transform_0(%arg0: i32, %arg1: i32) -> (i32, i32) {
    %c0_i32 = arith.constant 0 : i32
    %c0_i32_0 = arith.constant 0 : i32
    return %arg0, %c0_i32 : i32, i32
  }
  func.func @transform_1(%arg0: i32, %arg1: i32) -> (i32, i32, i32) {
    %c0_i32 = arith.constant 0 : i32
    %c0_i32_0 = arith.constant 0 : i32
    %c0_i32_1 = arith.constant 0 : i32
    return %arg1, %c0_i32, %c0_i32_0 : i32, i32, i32
  }
  func.func @transform_2(%arg0: i32, %arg1: i32) -> (i32, i32, i32) {
    %c0_i32 = arith.constant 0 : i32
    %c0_i32_0 = arith.constant 0 : i32
    %c0_i32_1 = arith.constant 0 : i32
    return %arg1, %c0_i32, %c0_i32_0 : i32, i32, i32
  }
  func.func @transform_3(%arg0: i32, %arg1: i32) -> (i32, i32) {
    %c0_i32 = arith.constant 0 : i32
    %c0_i32_0 = arith.constant 0 : i32
    return %arg0, %c0_i32 : i32, i32
  }
}

</mosaic_0001>

<llo_original>
// kernel: tpu_custom_call.1
$region0: #{tpu_custom_call.1}
  #allocation0 [shape = 'u32[]', space=smem, size = 0x4, offset = 0x4, fixed_abs, tag = 'smem constant byte address 0x4 - core index']
  #allocation1 [shape = 'u32[144,128]{1,0:T(1,128)}', space=vmem, size = 0x12000, scoped, tag = 'internal scratch']
  #allocation2 [shape = 'f32[16,128]{1,0:T(8,128)}', space=vmem, size = 0x2000, scoped, tag = 'scratch operand']
  %s0 = inlined_call_operand.hbm [shape: bf16[16,128], index: 0, kind: input, shape index: {}]
  %s1 = inlined_call_operand.hbm [shape: bf16[2,128,128], index: 1, kind: input, shape index: {}]
  %s2 = inlined_call_operand.vmem [shape: f32[2,1,128], index: 2, kind: input, shape index: {}]
  %s3 = inlined_call_operand.hbm [shape: f32[16,128], index: 3, kind: output, shape index: {}]
  %s4 = sld [smem:[#allocation0]]
  $region61: #{tpu_custom_call.1} parent=0
    _
  %s6 = ssub.s32 1, %s4
  %s7 = scalar_select 0, %s6, %s4
  $region1: #{tpu_custom_call.1} parent=0
    #allocation3 [shape = 'u8[4096]{0}', space=vmem, size = 0x1000, scoped, tag = 'input window, operand 0, single buffered']
    #allocation4 [shape = 's32[2]{0}', space=sflag, size = 0x8, scoped, tag = 'scoped memory for tpu_custom_call.1']
    #allocation5 [shape = 's32[2]{0}', space=sflag, size = 0x8, scoped, tag = 'scoped memory for tpu_custom_call.1']
    #allocation6 [shape = 'u8[65536]{0}', space=vmem, size = 0x10000, scoped, tag = 'input window, operand 1']
    #allocation7 [shape = 's32[2]{0}', space=sflag, size = 0x8, scoped, tag = 'scoped memory for tpu_custom_call.1']
    #allocation8 [shape = 'u8[8192]{0}', space=vmem, size = 0x2000, scoped, tag = 'output window, operand 0, single buffered']
    %8 = vsyncpa [#allocation4], 0
    %9 = vsyncpa [#allocation7], 0
    %s10 = scalar_lea.sflag [#allocation7], 1
    %11 = vsyncpa %s10, 0
    %12 = vsyncpa [#allocation5], 0
    loop: start=0, step=1, limit=4
    $region2: #{tpu_custom_call.1} parent=1 // loop_pre_header
      _
    $region3: #{tpu_custom_call.1} parent=1 // loop_header
      %s14 = sphi 0, %s18
      %p15 = scmp.ge.s32.totalorder %s14, 4
      %s21 = sphi 0, %s33
      %s22 = sphi 0, %s29
      %s23 = sphi 0, %s21
      %s24 = sphi 0, %s22
      %s25 = sphi 0, %s23
      %s26 = sphi 0, %s24
      %s36 = sphi 0, %s38
      %s39 = sphi 0, %s36
      %s40 = sphi 0, %s39
      %s56 = sphi 0, %s40
      %s62 = sphi 0, %s64
      %s65 = sphi 0, %s62
      %s66 = sphi 0, %s65
      %s82 = sphi 0, %s66
      %s88 = sphi 0, %s90
      %s91 = sphi 0, %s88
      %s92 = sphi 0, %s91
      %s108 = sphi 0, %s92
      %s114 = sphi 0, %s116
      %s117 = sphi 0, %s114
      %s118 = sphi 0, %s117
      %s134 = sphi 0, %s118
    $region4: #{tpu_custom_call.1} parent=1 // loop_header_branch
      %17 = sbr.rel (%p15) target = $region8
    $region5: #{tpu_custom_call.1} parent=1 // loop_body
      %s19 = ssub.s32 %s14, 1
      %s20 = ssub.s32 %s14, 2
      %s27 = sadd.s32 1, %s22
      %p28 = scmp.ge.s32.totalorder %s27, 2
      %s29 = scalar_select %p28, 0, %s27
      %s30 = sadd.s32 1, %s21
      %s31 = scalar_select %p28, %s30, %s21
      %p32 = scmp.ge.s32.totalorder %s31, 1
      %s33 = scalar_select %p32, 0, %s31
      %s34 = ssub.s32 %s21, %s33
      %p35 = scmp.eq.s32.totalorder %s34, 0
      %s37 = sadd.s32 %s36, 1
      %s38 = scalar_select %p35, %s36, %s37
      %p41 = pneg %p35
      %p42 = scmp.eq.s32.totalorder %s14, 1
      %p43 = por %p41, %p42
      %p44 = scmp.ne.s32.totalorder %s36, %s39
      %p45 = scmp.eq.s32.totalorder %s14, 0
      %p46 = por %p44, %p45
      %p47 = scmp.ne.s32.totalorder %s36, %s39
      %p48 = scmp.eq.s32.totalorder %s19, 1
      %p49 = por %p47, %p48
      %p50 = scmp.ne.s32.totalorder %s39, %s40
      %p51 = scmp.eq.s32.totalorder %s19, 0
      %p52 = por %p50, %p51
      %p53 = scmp.ne.s32.totalorder %s39, %s40
      %p54 = scmp.eq.s32.totalorder %s20, 1
      %p55 = por %p53, %p54
      %p57 = scmp.ne.s32.totalorder %s40, %s56
      %p58 = scmp.eq.s32.totalorder %s20, 0
      %p59 = por %p57, %p58
      %s60 = ssub.s32 %s22, %s29
      %p61 = scmp.eq.s32.totalorder %s60, 0
      %s63 = sadd.s32 %s62, 1
      %s64 = scalar_select %p61, %s62, %s63
      %p67 = pneg %p61
      %p68 = scmp.eq.s32.totalorder %s14, 1
      %p69 = por %p67, %p68
      %p70 = scmp.ne.s32.totalorder %s62, %s65
      %p71 = scmp.eq.s32.totalorder %s14, 0
      %p72 = por %p70, %p71
      %p73 = scmp.ne.s32.totalorder %s62, %s65
      %p74 = scmp.eq.s32.totalorder %s19, 1
      %p75 = por %p73, %p74
      %p76 = scmp.ne.s32.totalorder %s65, %s66
      %p77 = scmp.eq.s32.totalorder %s19, 0
      %p78 = por %p76, %p77
      %p79 = scmp.ne.s32.totalorder %s65, %s66
      %p80 = scmp.eq.s32.totalorder %s20, 1
      %p81 = por %p79, %p80
      %p83 = scmp.ne.s32.totalorder %s66, %s82
      %p84 = scmp.eq.s32.totalorder %s20, 0
      %p85 = por %p83, %p84
      %s86 = ssub.s32 %s22, %s29
      %p87 = scmp.eq.s32.totalorder %s86, 0
      %s89 = sadd.s32 %s88, 1
      %s90 = scalar_select %p87, %s88, %s89
      %p93 = pneg %p87
      %p94 = scmp.eq.s32.totalorder %s14, 1
      %p95 = por %p93, %p94
      %p96 = scmp.ne.s32.totalorder %s88, %s91
      %p97 = scmp.eq.s32.totalorder %s14, 0
      %p98 = por %p96, %p97
      %p99 = scmp.ne.s32.totalorder %s88, %s91
      %p100 = scmp.eq.s32.totalorder %s19, 1
      %p101 = por %p99, %p100
      %p102 = scmp.ne.s32.totalorder %s91, %s92
      %p103 = scmp.eq.s32.totalorder %s19, 0
      %p104 = por %p102, %p103
      %p105 = scmp.ne.s32.totalorder %s91, %s92
      %p106 = scmp.eq.s32.totalorder %s20, 1
      %p107 = por %p105, %p106
      %p109 = scmp.ne.s32.totalorder %s92, %s108
      %p110 = scmp.eq.s32.totalorder %s20, 0
      %p111 = por %p109, %p110
      %s112 = ssub.s32 %s21, %s33
      %p113 = scmp.eq.s32.totalorder %s112, 0
      %s115 = sadd.s32 %s114, 1
      %s116 = scalar_select %p113, %s114, %s115
      %p119 = pneg %p113
      %p120 = scmp.eq.s32.totalorder %s14, 1
      %p121 = por %p119, %p120
      %p122 = scmp.ne.s32.totalorder %s114, %s117
      %p123 = scmp.eq.s32.totalorder %s14, 0
      %p124 = por %p122, %p123
      %p125 = scmp.ne.s32.totalorder %s114, %s117
      %p126 = scmp.eq.s32.totalorder %s19, 1
      %p127 = por %p125, %p126
      %p128 = scmp.ne.s32.totalorder %s117, %s118
      %p129 = scmp.eq.s32.totalorder %s19, 0
      %p130 = por %p128, %p129
      %p131 = scmp.ne.s32.totalorder %s117, %s118
      %p132 = scmp.eq.s32.totalorder %s20, 1
      %p133 = por %p131, %p132
      %p135 = scmp.ne.s32.totalorder %s118, %s134
      %p136 = scmp.eq.s32.totalorder %s20, 0
      %p137 = por %p135, %p136
      %p138 = scmp.le.s32.totalorder 1, %s14
      %p139 = scmp.lt.s32.totalorder %s14, 3
      %p140 = pnand %p138, %p139
      %p141 = pneg %p140
      // Predicated region
      $region9: #{tpu_custom_call.1} parent=5 // pred_check
        _
      $region10: #{tpu_custom_call.1} parent=5 // pred_check_branch
        %143 = sbr.rel (%p140) target = $region12
      $region11: #{tpu_custom_call.1} parent=5 // pred_region
        %s144 = ssub.s32 %s14, 1
        // Predicated region
        $region13: #{tpu_custom_call.1} parent=11 // pred_check
          %p145 = pneg %p52
        $region14: #{tpu_custom_call.1} parent=11 // pred_check_branch
          %147 = sbr.rel (%p145) target = $region16
        $region15: #{tpu_custom_call.1} parent=11 // pred_region
          %s148 = smul.u32 2, %s23
          %s150 = ssub.s32 128, 128
          %151 = vsyncadd [#allocation4], %s150
          %s152 = smul.addr %s148, 64
          %s153 = scalar_lea.hbm %s0, %s152
          %s154 = sshll.u32 [#allocation3], 4
          %s155 = int_to_ptr.vmem [resolvable:$true] %s154
          %160 = dma.hbm_to_vmem [thread:$0]  %s153, 128, %s155, [#allocation4], 64, 64, 4
        $region16: #{tpu_custom_call.1} parent=11 // pred_fallthru
          _
      $region12: #{tpu_custom_call.1} parent=5 // pred_fallthru
        _
      %p161 = scmp.lt.s32.totalorder %s14, 2
      // Predicated region
      $region17: #{tpu_custom_call.1} parent=5 // pred_check
        %p162 = pneg %p161
      $region18: #{tpu_custom_call.1} parent=5 // pred_check_branch
        %164 = sbr.rel (%p162) target = $region20
      $region19: #{tpu_custom_call.1} parent=5 // pred_region
        // Predicated region
        $region21: #{tpu_custom_call.1} parent=19 // pred_check
          %p165 = pneg %p72
        $region22: #{tpu_custom_call.1} parent=19 // pred_check_branch
          %167 = sbr.rel (%p165) target = $region24
        $region23: #{tpu_custom_call.1} parent=19 // pred_region
          %s168 = sand.u32 %s62, 1
          %s169 = scalar_lea.sflag [#allocation7], %s168
          %s170 = sand.u32 %s62, 1
          %s171 = smul.addr %s170, 64
          %s172 = scalar_lea.vmem [#allocation6], %s171
          %s174 = ssub.s32 1024, 1024
          %175 = vsyncadd %s169, %s174
          %s176 = smul.addr %s22, 16
          %s177 = smul.addr %s176, 64
          %s178 = scalar_lea.hbm %s1, %s177
          %s179 = sshll.u32 %s172, 4
          %s180 = int_to_ptr.vmem [resolvable:$true] %s179
          %185 = dma.hbm_to_vmem [thread:$0]  %s178, 1024, %s180, %s169, 64, 64, 4
        $region24: #{tpu_custom_call.1} parent=19 // pred_fallthru
          _
        // Predicated region
        $region25: #{tpu_custom_call.1} parent=19 // pred_check
          %p186 = pneg %p98
        $region26: #{tpu_custom_call.1} parent=19 // pred_check_branch
          %188 = sbr.rel (%p186) target = $region28
        $region27: #{tpu_custom_call.1} parent=19 // pred_region
          %p189 = scmp.lt.s32.totalorder %s22, 1
          %s190 = scalar_select %p189, %s22, 1
          %s191 = scalar_lea.vmem %s2, %s190
        $region28: #{tpu_custom_call.1} parent=19 // pred_fallthru
          _
      $region20: #{tpu_custom_call.1} parent=5 // pred_fallthru
        _
      %p192 = scmp.le.s32.totalorder 1, %s14
      %p193 = scmp.lt.s32.totalorder %s14, 3
      %p194 = pnand %p192, %p193
      %p195 = pneg %p194
      // Predicated region
      $region29: #{tpu_custom_call.1} parent=5 // pred_check
        _
      $region30: #{tpu_custom_call.1} parent=5 // pred_check_branch
        %197 = sbr.rel (%p194) target = $region32
      $region31: #{tpu_custom_call.1} parent=5 // pred_region
        %s198 = ssub.s32 %s14, 1
        // Predicated region
        $region33: #{tpu_custom_call.1} parent=31 // pred_check
          %p199 = pneg %p52
        $region34: #{tpu_custom_call.1} parent=31 // pred_check_branch
          %201 = sbr.rel (%p199) target = $region36
        $region35: #{tpu_custom_call.1} parent=31 // pred_region
          %202 = dma.done [#allocation4], 128
        $region36: #{tpu_custom_call.1} parent=31 // pred_fallthru
          _
        %s203 = sand.u32 %s65, 1
        %s204 = scalar_lea.sflag [#allocation7], %s203
        %s205 = sand.u32 %s65, 1
        %s206 = smul.addr %s205, 64
        %s207 = scalar_lea.vmem [#allocation6], %s206
        // Predicated region
        $region37: #{tpu_custom_call.1} parent=31 // pred_check
          %p208 = pneg %p78
        $region38: #{tpu_custom_call.1} parent=31 // pred_check_branch
          %210 = sbr.rel (%p208) target = $region40
        $region39: #{tpu_custom_call.1} parent=31 // pred_region
          %211 = dma.done %s204, 1024
        $region40: #{tpu_custom_call.1} parent=31 // pred_fallthru
          _
        %p212 = pneg %p52
        %p213 = pneg %p49
        %s214 = sand.u32 %s65, 1
        %s215 = scalar_lea.sflag [#allocation7], %s214
        %s216 = sand.u32 %s65, 1
        %s217 = smul.addr %s216, 64
        %s218 = scalar_lea.vmem [#allocation6], %s217
        %p219 = pneg %p78
        %p220 = pneg %p75
        %p221 = scmp.lt.s32.totalorder %s24, 1
        %s222 = scalar_select %p221, %s24, 1
        %s223 = scalar_lea.vmem %s2, %s222
        %p224 = pneg %p104
        %p225 = pneg %p101
        %p226 = pneg %p130
        %p227 = pneg %p127
        %s228 = smul.u32 2, %s23
        %p229 = scmp.lt.s32.totalorder %s24, 1
        %s230 = scalar_select %p229, %s24, 1
        %s231 = scalar_lea.vmem %s2, %s230
        %s232 = smul.u32 2, %s23
        %p234 = scmp.eq.s32.totalorder %s24, 0
        // Predicated region
        $region41: #{tpu_custom_call.1} parent=31 // pred_check
          %p235 = pneg %p234
        $region42: #{tpu_custom_call.1} parent=31 // pred_check_branch
          %237 = sbr.rel (%p235) target = $region44
        $region43: #{tpu_custom_call.1} parent=31 // pred_region
          %v238 = vld [vmem:[#allocation3] sm:$0xf]
          %v239 = vld [vmem:[#allocation3 + $0x4] sm:$0xf]
          %v240 = vunpack.c.l.bf16 %v238
          %v241 = vunpack.c.l.bf16 %v239
          %242 = vst [vmem:[#allocation2] sm:$0xff] %v240
          %243 = vst [vmem:[#allocation2 + $0x8] sm:$0xff] %v241
        $region44: #{tpu_custom_call.1} parent=31 // pred_fallthru
          _
        %v244 = vld [vmem:[#allocation2] sm:$0xff]
        %v245 = vld [vmem:[#allocation2 + $0x8] sm:$0xff]
        %v246 = vpack.c.bf16 %v245, %v244
        %v247 = vld [vmem:[%s207] sm:$0xf]
        %v248 = vld [vmem:[%s207 + $0x4] sm:$0xf]
        %v249 = vld [vmem:[%s207 + $0x8] sm:$0xf]
        %v250 = vld [vmem:[%s207 + $0xc] sm:$0xf]
        %v251 = vld [vmem:[%s207 + $0x10] sm:$0xf]
        %v252 = vld [vmem:[%s207 + $0x14] sm:$0xf]
        %v253 = vld [vmem:[%s207 + $0x18] sm:$0xf]
        %v254 = vld [vmem:[%s207 + $0x1c] sm:$0xf]
        %v255 = vld [vmem:[%s207 + $0x20] sm:$0xf]
        %v256 = vld [vmem:[%s207 + $0x24] sm:$0xf]
        %v257 = vld [vmem:[%s207 + $0x28] sm:$0xf]
        %v258 = vld [vmem:[%s207 + $0x2c] sm:$0xf]
        %v259 = vld [vmem:[%s207 + $0x30] sm:$0xf]
        %v260 = vld [vmem:[%s207 + $0x34] sm:$0xf]
        %v261 = vld [vmem:[%s207 + $0x38] sm:$0xf]
        %v262 = vld [vmem:[%s207 + $0x3c] sm:$0xf]
        %v263 = vld [vmem:[%s231] sm:$0x1]
        %v265 = vlaneseq
        %v266 = vshrl.u32 %v265, 7
        %v267 = vsub.s32 0, %v266
        %v268 = vrot.slane %v263, %v267
        %v286 = vunpack.c.l.b16 %v247
        %v287 = vunpack.c.l.b16 %v248
        %v288 = vunpack.c.l.b16 %v249
        %v289 = vunpack.c.l.b16 %v250
        %v290 = vunpack.c.l.b16 %v251
        %v291 = vunpack.c.l.b16 %v252
        %v292 = vunpack.c.l.b16 %v253
        %v293 = vunpack.c.l.b16 %v254
        %v294 = vunpack.c.l.b16 %v255
        %v295 = vunpack.c.l.b16 %v256
        %v296 = vunpack.c.l.b16 %v257
        %v297 = vunpack.c.l.b16 %v258
        %v298 = vunpack.c.l.b16 %v259
        %v299 = vunpack.c.l.b16 %v260
        %v300 = vunpack.c.l.b16 %v261
        %v301 = vunpack.c.l.b16 %v262
        %v302 = vpack.c.b16 %v287, %v286
        %v303 = vpack.c.b16 %v289, %v288
        %v304 = vpack.c.b16 %v291, %v290
        %v305 = vpack.c.b16 %v293, %v292
        %v306 = vpack.c.b16 %v295, %v294
        %v307 = vpack.c.b16 %v297, %v296
        %v308 = vpack.c.b16 %v299, %v298
        %v309 = vpack.c.b16 %v301, %v300
        %318 = vmatprep.subr.bf16.mxu0 0
        %319 = vmatpush1.bf16.msra.mxu0 %v302
        %320 = vmatprep.subr.bf16.mxu0 0
        %321 = vmatpush1.bf16.msra.mxu0 %v303
        %322 = vmatprep.subr.bf16.mxu0 0
        %323 = vmatpush1.bf16.msra.mxu0 %v304
        %324 = vmatprep.subr.bf16.mxu0 0
        %325 = vmatpush1.bf16.msra.mxu0 %v305
        %326 = vmatprep.subr.bf16.mxu0 0
        %327 = vmatpush1.bf16.msra.mxu0 %v306
        %328 = vmatprep.subr.bf16.mxu0 0
        %329 = vmatpush1.bf16.msra.mxu0 %v307
        %330 = vmatprep.subr.bf16.mxu0 0
        %331 = vmatpush1.bf16.msra.mxu0 %v308
        %332 = vmatprep.subr.bf16.mxu0 0
        %333 = vmatpush1.bf16.msra.mxu0 %v309
        %334 = vmatprep.subr.bf16.mxu0 0
        %335 = vmatpush1.bf16.msra.mxu0 0
        %336 = vmatprep.subr.bf16.mxu0 0
        %337 = vmatpush1.bf16.msra.mxu0 0
        %338 = vmatprep.subr.bf16.mxu0 0
        %339 = vmatpush1.bf16.msra.mxu0 0
        %340 = vmatprep.subr.bf16.mxu0 0
        %341 = vmatpush1.bf16.msra.mxu0 0
        %342 = vmatprep.subr.bf16.mxu0 0
        %343 = vmatpush1.bf16.msra.mxu0 0
        %344 = vmatprep.subr.bf16.mxu0 0
        %345 = vmatpush1.bf16.msra.mxu0 0
        %346 = vmatprep.subr.bf16.mxu0 0
        %347 = vmatpush1.bf16.msra.mxu0 0
        %348 = vmatprep.subr.bf16.mxu0 0
        %349 = vmatpush1.bf16.msra.mxu0 0
        %350 = vmatprep.mubr.bf16.mxu0 0
        %351 = vmatmul.mubr.bf16.gmra.mrb[0].mxu0 %v246
        %v352 = vpop.f32.mrb[0].mxu0
        %v353 = vadd.f32 %v268, %v352
        %v354 = vpop.f32.mrb[0].mxu0
        %v355 = vpop.f32.mrb[0].mxu0
        %v356 = vadd.f32 %v268, %v355
        %v357 = vpop.f32.mrb[0].mxu0
        %358 = vdwg.mxu0
        %359 = vst [vmem:[#allocation2] sm:$0xff] %v353
        %360 = vst [vmem:[#allocation2 + $0x8] sm:$0xff] %v356
        %p361 = scmp.eq.s32.totalorder %s24, 1
        // Predicated region
        $region45: #{tpu_custom_call.1} parent=31 // pred_check
          %p362 = pneg %p361
        $region46: #{tpu_custom_call.1} parent=31 // pred_check_branch
          %364 = sbr.rel (%p362) target = $region48
        $region47: #{tpu_custom_call.1} parent=31 // pred_region
          %365 = vst [vmem:[#allocation8] sm:$0xff] %v353
          %366 = vst [vmem:[#allocation8 + $0x8] sm:$0xff] %v356
        $region48: #{tpu_custom_call.1} parent=31 // pred_fallthru
          _
        // Predicated region
        $region49: #{tpu_custom_call.1} parent=31 // pred_check
          %p367 = pneg %p127
        $region50: #{tpu_custom_call.1} parent=31 // pred_check_branch
          %369 = sbr.rel (%p367) target = $region52
        $region51: #{tpu_custom_call.1} parent=31 // pred_region
          %s370 = smul.u32 2, %s23
          %s372 = ssub.s32 256, 256
          %373 = vsyncadd [#allocation5], %s372
          %s374 = smul.addr %s370, 128
          %s375 = scalar_lea.hbm %s3, %s374
          %s376 = sshll.u32 [#allocation8], 4
          %s377 = int_to_ptr.vmem [resolvable:$true] %s376
          %382 = dma.vmem_to_hbm [thread:$0]  %s377, 256, %s375, [#allocation5], 128, 128, 8
        $region52: #{tpu_custom_call.1} parent=31 // pred_fallthru
          _
        // Predicated region
        $region53: #{tpu_custom_call.1} parent=31 // pred_check
          %p383 = pneg %p127
        $region54: #{tpu_custom_call.1} parent=31 // pred_check_branch
          %385 = sbr.rel (%p383) target = $region56
        $region55: #{tpu_custom_call.1} parent=31 // pred_region
          %386 = dma.done [#allocation5], 256
        $region56: #{tpu_custom_call.1} parent=31 // pred_fallthru
          _
      $region32: #{tpu_custom_call.1} parent=5 // pred_fallthru
        _
      %p387 = scmp.le.s32.totalorder 2, %s14
      // Predicated region
      $region57: #{tpu_custom_call.1} parent=5 // pred_check
        %p388 = pneg %p387
      $region58: #{tpu_custom_call.1} parent=5 // pred_check_branch
        %390 = sbr.rel (%p388) target = $region60
      $region59: #{tpu_custom_call.1} parent=5 // pred_region
        %s391 = ssub.s32 %s14, 2
      $region60: #{tpu_custom_call.1} parent=5 // pred_fallthru
        _
    $region6: #{tpu_custom_call.1} parent=1 // loop_footer
      %s18 = sadd.s32 1, %s14
    $region7: #{tpu_custom_call.1} parent=1 // loop_footer_branch
      %13 = sbr.rel target = $region3
    $region8: #{tpu_custom_call.1} parent=1 // loop_exit
      _
    %392 = vsyncpa [#allocation4], 1
    %s393 = scalar_lea.sflag [#allocation4], 1
    %394 = vsyncpa %s393, 1
    %395 = vsyncpa [#allocation7], 1
    %s396 = scalar_lea.sflag [#allocation7], 1
    %397 = vsyncpa %s396, 1
    %398 = vsyncpa [#allocation5], 1
    %s399 = scalar_lea.sflag [#allocation5], 1
    %400 = vsyncpa %s399, 1

</llo_original>
